<compile_context>
chip_gen: v7x
topology: tpu7x:2x2x1
jax: 0.10.0
libtpu: 0.0.40
codegen_flags: <defaults>
</compile_context>

<pallas_src>
import jax
import jax.numpy as jnp
from jax.experimental import pallas as pl
from jax.experimental.pallas import tpu as pltpu

LANES = 128


def _round_up(x, m):
    return ((x + m - 1) // m) * m


def _sublane_pack(dtype):
    # Native packed sublane count: 8 for 4-byte, 16 for 2-byte, 32 for 1-byte dtypes.
    return max(8, 32 // jnp.dtype(dtype).itemsize)


def _tpu_tuning():
    """Return (target_block_bytes, vmem_limit_bytes) for the local TPU generation."""
    try:
        kind = jax.devices()[0].device_kind.lower()
    except Exception:
        kind = ""
    if "v7" in kind:
        # 64 MiB physical VMEM per TC: 4 live buffers (in+out, double-buffered)
        # of 8 MiB = 32 MiB, comfortably under a 48 MiB scoped limit.
        return 8 * 1024 * 1024, 48 * 1024 * 1024
    if "v6" in kind:
        # 128 MiB VMEM, ~1.4 TB/s: larger tiles push closer to the HBM roofline.
        return 12 * 1024 * 1024, 64 * 1024 * 1024
    # v5e and everything else: explicit raise is load-bearing (16 MiB default scope).
    return 8 * 1024 * 1024, 48 * 1024 * 1024


def _bias_ams_kernel(alpha_ref, beta_ref, x_ref, o_ref):
    # alpha_ref / beta_ref are (1,) f32 scalars in SMEM; x_ref / o_ref are VMEM tiles.
    alpha = alpha_ref[0]
    beta = beta_ref[0]
    # 2*(alpha*((x+1)*0.5) + beta - 0.5) == alpha*x + (alpha + 2*beta - 1)
    shift = alpha + 2.0 * beta - 1.0
    x = x_ref[...].astype(jnp.float32)
    o_ref[...] = (alpha * x + shift).astype(o_ref.dtype)


def bias_layer_ams(x, alpha, beta):
    """y = 2 * (alpha * ((x + 1) * 0.5) + beta - 0.5), elementwise, scalar params."""
    orig_shape = x.shape
    orig_dtype = x.dtype
    n = x.size
    itemsize = jnp.dtype(orig_dtype).itemsize

    alpha32 = jnp.asarray(alpha, dtype=jnp.float32).reshape(())
    beta32 = jnp.asarray(beta, dtype=jnp.float32).reshape(())
    scale = alpha32
    shift = alpha32 + 2.0 * beta32 - 1.0

    x_flat = jnp.ravel(x)
    n_main = (n // LANES) * LANES
    n_tail = n - n_main

    if n_main == 0:
        # Tiny input (< 128 elements): a kernel launch costs more than the compute.
        y = (scale * x_flat.astype(jnp.float32) + shift).astype(orig_dtype)
        return y.reshape(orig_shape)

    # 128-aligned prefix goes through the kernel (free reshape when n_tail == 0).
    x_main = x_flat if n_tail == 0 else x_flat[:n_main]
    rows = n_main // LANES
    x2d = x_main.reshape(rows, LANES)

    target_block_bytes, vmem_limit = _tpu_tuning()
    pack = _sublane_pack(orig_dtype)
    max_tile_rows = max(pack, (target_block_bytes // (LANES * itemsize)) // pack * pack)

    if rows <= max_tile_rows:
        # Single block; round rows to the dtype's packed sublane count.
        tr = _round_up(rows, pack)
    else:
        # >= 2 roughly-equal blocks; keep the count even so both v7x TensorCores
        # get balanced work under dimension_semantics=("parallel",).
        nblk = pl.cdiv(rows, max_tile_rows)
        if nblk % 2 == 1:
            nblk += 1
        tr = _round_up(pl.cdiv(rows, nblk), pack)
    grid = (pl.cdiv(rows, tr),)  # partial last block handled by masked stores

    alpha_s = alpha32.reshape((1,))
    beta_s = beta32.reshape((1,))

    out2d = pl.pallas_call(
        _bias_ams_kernel,
        out_shape=jax.ShapeDtypeStruct((rows, LANES), orig_dtype),
        grid=grid,
        in_specs=[
            pl.BlockSpec(memory_space=pltpu.SMEM),  # alpha (1,)
            pl.BlockSpec(memory_space=pltpu.SMEM),  # beta  (1,)
            pl.BlockSpec((tr, LANES), lambda i: (i, 0)),
        ],
        out_specs=pl.BlockSpec((tr, LANES), lambda i: (i, 0)),
        compiler_params=pltpu.CompilerParams(
            dimension_semantics=("parallel",),
            vmem_limit_bytes=vmem_limit,
        ),
        cost_estimate=pl.CostEstimate(
            flops=2 * n_main,
            transcendentals=0,
            bytes_accessed=2 * n_main * itemsize,
        ),
    )(alpha_s, beta_s, x2d)

    out_main = out2d.reshape(-1)
    if n_tail == 0:
        return out_main.reshape(orig_shape)
    # <=127-element tail in plain jnp (avoids full-array pad + output-slice copies).
    y_tail = (scale * x_flat[n_main:].astype(jnp.float32) + shift).astype(orig_dtype)
    return jnp.concatenate([out_main, y_tail]).reshape(orig_shape)


if __name__ == "__main__":
    key = jax.random.PRNGKey(0)
    # Input consistent with a typical NCHW activation passed to BiasLayer_AMS.
    x = jax.random.normal(key, (2, 4, 16, 16), dtype=jnp.float32)

    def ref(x, a, b):
        return 2.0 * (a * ((x + 1.0) * 0.5) + b - 0.5)

    # 1) Parameter init matching the module's __init__: alpha=1, beta=0 (=> y == x).
    alpha = jnp.ones((1,), dtype=jnp.float32)
    beta = jnp.zeros((1,), dtype=jnp.float32)
    y = jax.block_until_ready(bias_layer_ams(x, alpha, beta))
    assert y.shape == x.shape and y.dtype == x.dtype
    assert jnp.allclose(y, ref(x, 1.0, 0.0), atol=1e-6, rtol=1e-6)

    # 2) Non-trivial deterministic alpha/beta to exercise the full expression.
    alpha2 = jnp.full((1,), 1.5, dtype=jnp.float32)
    beta2 = jnp.full((1,), -0.25, dtype=jnp.float32)
    y2 = jax.block_until_ready(bias_layer_ams(x, alpha2, beta2))
    assert jnp.allclose(y2, ref(x, 1.5, -0.25), atol=1e-5, rtol=1e-5)

    # 3) bf16 input: single (16, 128) native packed tile (dtype-aware sublane rounding).
    xb = x.astype(jnp.bfloat16)
    yb = jax.block_until_ready(bias_layer_ams(xb, alpha2, beta2))
    assert yb.shape == x.shape and yb.dtype == jnp.bfloat16
    assert jnp.allclose(
        yb.astype(jnp.float32), ref(xb.astype(jnp.float32), 1.5, -0.25),
        atol=2e-2, rtol=2e-2)

    # 4) Unaligned element count (2*3*11*13 = 858): kernel on the 768-element
    #    128-aligned prefix, <=127-element tail handled in plain jnp.
    xu = jax.random.normal(jax.random.PRNGKey(1), (2, 3, 11, 13), dtype=jnp.float32)
    yu = jax.block_until_ready(bias_layer_ams(xu, alpha2, beta2))
    assert yu.shape == xu.shape
    assert jnp.allclose(yu, ref(xu, 1.5, -0.25), atol=1e-5, rtol=1e-5)

    print("KERNEL_OK")
</pallas_src>

<mosaic_0001>
module attributes {stable_mosaic.version = 11 : i64} {
  func.func @_bias_ams_kernel(%arg0: i32, %arg1: memref<1xf32, #tpu.memory_space<smem>>, %arg2: memref<1xf32, #tpu.memory_space<smem>>, %arg3: memref<16x128xf32, #tpu.memory_space<vmem>>, %arg4: memref<16x128xf32, #tpu.memory_space<vmem>>) attributes {dimension_semantics = [#tpu.dimension_semantics<parallel>], iteration_bounds = array<i64: 1>, scalar_prefetch = 0 : i64, scratch_operands = 0 : i64, tpu.core_type = #tpu.core_type<tc>, window_params = [{transform_indices = @transform_0, window_bounds = array<i64: 1>}, {transform_indices = @transform_1, window_bounds = array<i64: 1>}, {transform_indices = @transform_2, window_bounds = array<i64: 16, 128>}, {transform_indices = @transform_3, window_bounds = array<i64: 16, 128>}]} {
    %c0 = arith.constant 0 : index
    %0 = memref.load %arg1[%c0] : memref<1xf32, #tpu.memory_space<smem>>
    %c0_0 = arith.constant 0 : index
    %1 = memref.load %arg2[%c0_0] : memref<1xf32, #tpu.memory_space<smem>>
    %cst = arith.constant 2.000000e+00 : f32
    %2 = arith.mulf %cst, %1 : f32
    %3 = arith.addf %0, %2 : f32
    %cst_1 = arith.constant 1.000000e+00 : f32
    %4 = arith.subf %3, %cst_1 : f32
    %c0_2 = arith.constant 0 : index
    %c0_3 = arith.constant 0 : index
    %5 = vector.load %arg3[%c0_2, %c0_3] : memref<16x128xf32, #tpu.memory_space<vmem>>, vector<16x128xf32>
    %6 = vector.broadcast %0 : f32 to vector<16x128xf32>
    %7 = arith.mulf %6, %5 : vector<16x128xf32>
    %8 = vector.broadcast %4 : f32 to vector<16x128xf32>
    %9 = arith.addf %7, %8 : vector<16x128xf32>
    %c0_4 = arith.constant 0 : index
    %c0_5 = arith.constant 0 : index
    %10 = vector.load %arg4[%c0_4, %c0_5] : memref<16x128xf32, #tpu.memory_space<vmem>>, vector<16x128xf32>
    tpu.vector_store %arg4[%c0_4, %c0_5], %9 {strides = array<i32>} : memref<16x128xf32, #tpu.memory_space<vmem>>, vector<16x128xf32>,
    return
  }
  func.func @transform_0(%arg0: i32) -> i32 {
    %c0_i32 = arith.constant 0 : i32
    %c0_i32_0 = arith.constant 0 : i32
    return %c0_i32 : i32
  }
  func.func @transform_1(%arg0: i32) -> i32 {
    %c0_i32 = arith.constant 0 : i32
    %c0_i32_0 = arith.constant 0 : i32
    return %c0_i32 : i32
  }
  func.func @transform_2(%arg0: i32) -> (i32, i32) {
    %c0_i32 = arith.constant 0 : i32
    %c0_i32_0 = arith.constant 0 : i32
    return %arg0, %c0_i32 : i32, i32
  }
  func.func @transform_3(%arg0: i32) -> (i32, i32) {
    %c0_i32 = arith.constant 0 : i32
    %c0_i32_0 = arith.constant 0 : i32
    return %arg0, %c0_i32 : i32, i32
  }
}

</mosaic_0001>

<llo_original>
// kernel: tpu_custom_call.1
$region0: #{tpu_custom_call.1}
  #allocation0 [shape = 'u32[]', space=smem, size = 0x4, offset = 0x4, fixed_abs, tag = 'smem constant byte address 0x4 - core index']
  #allocation1 [shape = 'u32[144,128]{1,0:T(1,128)}', space=vmem, size = 0x12000, scoped, tag = 'internal scratch']
  #allocation2 [shape = 'f32[1]{0:T(128)S(6)}', space=smem, size = 0x200, scoped, tag = 'scoped memory for tpu_custom_call.1']
  #allocation3 [shape = 'f32[1]{0:T(128)S(6)}', space=smem, size = 0x200, scoped, tag = 'scoped memory for tpu_custom_call.1']
  %s0 = inlined_call_operand.<no memory space> [shape: f32[1], index: 0, kind: input, shape index: {}]
  %s1 = inlined_call_operand.<no memory space> [shape: f32[1], index: 1, kind: input, shape index: {}]
  %s2 = inlined_call_operand.hbm [shape: f32[16,128], index: 2, kind: input, shape index: {}]
  %s3 = inlined_call_operand.hbm [shape: f32[16,128], index: 3, kind: output, shape index: {}]
  %s4 = sld [smem:[#allocation0]]
  $region26: #{tpu_custom_call.1} parent=0
    _
  %s6 = ssub.s32 1, %s4
  %s7 = scalar_select 0, %s6, %s4
  %8 = sst [smem:[#allocation2]] %s0
  %9 = sst [smem:[#allocation3]] %s1
  $region1: #{tpu_custom_call.1} parent=0
    #allocation4 [shape = 'u8[8192]{0}', space=vmem, size = 0x2000, scoped, tag = 'input window, operand 2, single buffered']
    #allocation5 [shape = 's32[1]{0}', space=sflag, size = 0x4, scoped, tag = 'scoped memory for tpu_custom_call.1']
    #allocation6 [shape = 's32[1]{0}', space=sflag, size = 0x4, scoped, tag = 'scoped memory for tpu_custom_call.1']
    #allocation7 [shape = 'u8[8192]{0}', space=vmem, size = 0x2000, scoped, tag = 'output window, operand 0, single buffered']
    %10 = vsyncpa [#allocation5], 0
    %11 = vsyncpa [#allocation6], 0
    // Predicated region
    $region2: #{tpu_custom_call.1} parent=1 // pred_check
      _
    $region3: #{tpu_custom_call.1} parent=1 // pred_check_branch
      %13 = sbr.rel (0) target = $region5
    $region4: #{tpu_custom_call.1} parent=1 // pred_region
      _
    $region5: #{tpu_custom_call.1} parent=1 // pred_fallthru
      _
    // Predicated region
    $region6: #{tpu_custom_call.1} parent=1 // pred_check
      _
    $region7: #{tpu_custom_call.1} parent=1 // pred_check_branch
      %15 = sbr.rel (0) target = $region9
    $region8: #{tpu_custom_call.1} parent=1 // pred_region
      _
    $region9: #{tpu_custom_call.1} parent=1 // pred_fallthru
      _
    // Predicated region
    $region10: #{tpu_custom_call.1} parent=1 // pred_check
      _
    $region11: #{tpu_custom_call.1} parent=1 // pred_check_branch
      %17 = sbr.rel (0) target = $region13
    $region12: #{tpu_custom_call.1} parent=1 // pred_region
      %s19 = ssub.s32 256, 256
      %20 = vsyncadd [#allocation5], %s19
      %s21 = sshll.u32 [#allocation4], 4
      %s22 = int_to_ptr.vmem [resolvable:$true] %s21
      %27 = dma.hbm_to_vmem [thread:$0]  %s2, 256, %s22, [#allocation5], 128, 128, 8
    $region13: #{tpu_custom_call.1} parent=1 // pred_fallthru
      _
    // Predicated region
    $region14: #{tpu_custom_call.1} parent=1 // pred_check
      _
    $region15: #{tpu_custom_call.1} parent=1 // pred_check_branch
      %29 = sbr.rel (0) target = $region17
    $region16: #{tpu_custom_call.1} parent=1 // pred_region
      %30 = dma.done [#allocation5], 256
    $region17: #{tpu_custom_call.1} parent=1 // pred_fallthru
      _
    %s31 = sld [smem:[#allocation2]]
    %s32 = sld [smem:[#allocation3]]
    %s33 = smul.f32 %s32, 2.0
    %s34 = sadd.f32 %s31, %s33
    %s35 = ssub.f32 %s34, 1.0
    %v36 = vld [vmem:[#allocation4] sm:$0xff]
    %v37 = vld [vmem:[#allocation4 + $0x8] sm:$0xff]
    %v38 = vstv %s31
    %v39 = vmul.f32 %v38, %v36
    %v40 = vmul.f32 %v38, %v37
    %v41 = vstv %s35
    %v42 = vadd.f32 %v39, %v41
    %v43 = vadd.f32 %v40, %v41
    %44 = vst [vmem:[#allocation7] sm:$0xff] %v42
    %45 = vst [vmem:[#allocation7 + $0x8] sm:$0xff] %v43
    // Predicated region
    $region18: #{tpu_custom_call.1} parent=1 // pred_check
      _
    $region19: #{tpu_custom_call.1} parent=1 // pred_check_branch
      %47 = sbr.rel (0) target = $region21
    $region20: #{tpu_custom_call.1} parent=1 // pred_region
      %s49 = ssub.s32 256, 256
      %50 = vsyncadd [#allocation6], %s49
      %s51 = sshll.u32 [#allocation7], 4
      %s52 = int_to_ptr.vmem [resolvable:$true] %s51
      %57 = dma.vmem_to_hbm [thread:$0]  %s52, 256, %s3, [#allocation6], 128, 128, 8
    $region21: #{tpu_custom_call.1} parent=1 // pred_fallthru
      _
    // Predicated region
    $region22: #{tpu_custom_call.1} parent=1 // pred_check
      _
    $region23: #{tpu_custom_call.1} parent=1 // pred_check_branch
      %59 = sbr.rel (0) target = $region25
    $region24: #{tpu_custom_call.1} parent=1 // pred_region
      %60 = dma.done [#allocation6], 256
    $region25: #{tpu_custom_call.1} parent=1 // pred_fallthru
      _
    %61 = vsyncpa [#allocation5], 1
    %62 = vsyncpa [#allocation6], 1

</llo_original>
